<compile_context>
chip_gen: v7x
topology: tpu7x:2x2x1
jax: 0.10.0
libtpu: 0.0.40
codegen_flags: <defaults>
</compile_context>

<pallas_src>
import jax
import jax.numpy as jnp
from jax.experimental import pallas as pl
from jax.experimental.pallas import tpu as pltpu

D_IN = 125      # logical feature dim
D_PAD = 128     # padded hidden dim (lane-aligned)
OUT_PAD = 8     # padded output dim for fc5 (sublane-friendly, only col 0 is real)


def _round_up(x, m):
    return ((x + m - 1) // m) * m


def _mlp_kernel(x_ref,
                w1_ref, b1_ref,
                w2_ref, b2_ref,
                w3_ref, b3_ref,
                w4_ref, b4_ref,
                w5_ref, b5_ref,
                o_ref):
    # One batch tile per grid step; weights stay resident in VMEM.
    def layer(h, w_ref, b_ref):
        y = jnp.dot(h.astype(jnp.bfloat16), w_ref[...],
                    preferred_element_type=jnp.float32)
        return jnp.maximum(y + b_ref[...], 0.0)

    h = x_ref[...]                      # (TB, 125) f32
    h = layer(h, w1_ref, b1_ref)        # (TB, 128)
    h = layer(h, w2_ref, b2_ref)
    h = layer(h, w3_ref, b3_ref)
    h = layer(h, w4_ref, b4_ref)
    # dropout (eval) == identity
    o_ref[...] = jnp.dot(h.astype(jnp.bfloat16), w5_ref[...],
                         preferred_element_type=jnp.float32) + b5_ref[...]


def prepare_params(params):
    """Pad / cast the weights ONCE (outside the forward hot path).

    Weights are stored transposed as (in, out); hidden dims padded to 128,
    fc5 output padded to 8. Weights -> bf16, biases stay f32.
    """
    def pad_w(w, rows, cols):
        din, dout = w.shape
        wp = jnp.zeros((rows, cols), jnp.float32).at[:din, :dout].set(w)
        return wp.astype(jnp.bfloat16)

    def pad_b(b, cols):
        return jnp.zeros((1, cols), jnp.float32).at[0, :b.shape[0]].set(b)

    return dict(
        w1=pad_w(params["w1"], D_IN, D_PAD),  b1=pad_b(params["b1"], D_PAD),
        w2=pad_w(params["w2"], D_PAD, D_PAD), b2=pad_b(params["b2"], D_PAD),
        w3=pad_w(params["w3"], D_PAD, D_PAD), b3=pad_b(params["b3"], D_PAD),
        w4=pad_w(params["w4"], D_PAD, D_PAD), b4=pad_b(params["b4"], D_PAD),
        w5=pad_w(params["w5"], D_PAD, OUT_PAD), b5=pad_b(params["b5"], OUT_PAD),
    )


def h4o1_forward(x, prep, max_tile=512):
    """x: (B, 125) float32; prep: output of prepare_params. Returns (B, 1) f32."""
    B = x.shape[0]
    TB = min(max_tile, _round_up(B, 8))      # batch tile (rows per grid step)
    B_pad = _round_up(B, TB)
    if B_pad != B:
        x = jnp.pad(x, ((0, B_pad - B), (0, 0)))

    n_tiles = B_pad // TB
    resident = lambda shape: pl.BlockSpec(shape, lambda i: (0, 0))

    out = pl.pallas_call(
        _mlp_kernel,
        out_shape=jax.ShapeDtypeStruct((B_pad, OUT_PAD), jnp.float32),
        grid=(n_tiles,),
        in_specs=[
            pl.BlockSpec((TB, D_IN), lambda i: (i, 0)),          # x tile
            resident((D_IN, D_PAD)),  resident((1, D_PAD)),       # fc1
            resident((D_PAD, D_PAD)), resident((1, D_PAD)),       # fc2
            resident((D_PAD, D_PAD)), resident((1, D_PAD)),       # fc3
            resident((D_PAD, D_PAD)), resident((1, D_PAD)),       # fc4
            resident((D_PAD, OUT_PAD)), resident((1, OUT_PAD)),   # fc5
        ],
        out_specs=pl.BlockSpec((TB, OUT_PAD), lambda i: (i, 0)),
        compiler_params=pltpu.CompilerParams(
            dimension_semantics=("parallel",)),
    )(x,
      prep["w1"], prep["b1"], prep["w2"], prep["b2"],
      prep["w3"], prep["b3"], prep["w4"], prep["b4"],
      prep["w5"], prep["b5"])

    # fc5 has 1 real output feature: take column 0, keep trailing dim like PyTorch.
    return out[:B, 0:1]


def init_params(key):
    """Deterministic init mimicking nn.Linear's U(-1/sqrt(fan_in), 1/sqrt(fan_in)).
    Weights are stored transposed: (in_features, out_features)."""
    params = {}
    dims = [(125, 125), (125, 125), (125, 125), (125, 125), (125, 1)]
    for i, (din, dout) in enumerate(dims, start=1):
        key, kw, kb = jax.random.split(key, 3)
        bound = 1.0 / (din ** 0.5)
        params[f"w{i}"] = jax.random.uniform(kw, (din, dout), jnp.float32, -bound, bound)
        params[f"b{i}"] = jax.random.uniform(kb, (dout,), jnp.float32, -bound, bound)
    return params


def reference_forward(x, params):
    h = x
    for i in range(1, 5):
        h = jnp.maximum(h @ params[f"w{i}"] + params[f"b{i}"], 0.0)
    return h @ params["w5"] + params["b5"]


if __name__ == "__main__":
    key = jax.random.PRNGKey(0)
    kx, kp = jax.random.split(key)
    B = 16
    x = jax.random.normal(kx, (B, 125), jnp.float32)
    params = init_params(kp)
    prep = prepare_params(params)

    out = h4o1_forward(x, prep)
    jax.block_until_ready(out)

    ref = reference_forward(x, params)
    assert out.shape == (B, 1), out.shape
    # bf16 MXU inputs (f32 accumulation) -> relaxed tolerance vs the f32 reference.
    assert jnp.allclose(out, ref, atol=3e-2, rtol=3e-2), "mismatch vs reference"
    print("KERNEL_OK")
</pallas_src>

<mosaic_0001>
module attributes {stable_mosaic.version = 11 : i64} {
  func.func @_mlp_kernel(%arg0: i32, %arg1: memref<16x125xf32, #tpu.memory_space<vmem>>, %arg2: memref<125x128xbf16, #tpu.memory_space<vmem>>, %arg3: memref<1x128xf32, #tpu.memory_space<vmem>>, %arg4: memref<128x128xbf16, #tpu.memory_space<vmem>>, %arg5: memref<1x128xf32, #tpu.memory_space<vmem>>, %arg6: memref<128x128xbf16, #tpu.memory_space<vmem>>, %arg7: memref<1x128xf32, #tpu.memory_space<vmem>>, %arg8: memref<128x128xbf16, #tpu.memory_space<vmem>>, %arg9: memref<1x128xf32, #tpu.memory_space<vmem>>, %arg10: memref<128x8xbf16, #tpu.memory_space<vmem>>, %arg11: memref<1x8xf32, #tpu.memory_space<vmem>>, %arg12: memref<16x8xf32, #tpu.memory_space<vmem>>) attributes {dimension_semantics = [#tpu.dimension_semantics<parallel>], iteration_bounds = array<i64: 1>, scalar_prefetch = 0 : i64, scratch_operands = 0 : i64, tpu.core_type = #tpu.core_type<tc>, window_params = [{transform_indices = @transform_0, window_bounds = array<i64: 16, 125>}, {pipeline_mode = #tpu.pipeline_mode<synchronous>, transform_indices = @transform_1, window_bounds = array<i64: 125, 128>}, {pipeline_mode = #tpu.pipeline_mode<synchronous>, transform_indices = @transform_2, window_bounds = array<i64: 1, 128>}, {pipeline_mode = #tpu.pipeline_mode<synchronous>, transform_indices = @transform_3, window_bounds = array<i64: 128, 128>}, {pipeline_mode = #tpu.pipeline_mode<synchronous>, transform_indices = @transform_4, window_bounds = array<i64: 1, 128>}, {pipeline_mode = #tpu.pipeline_mode<synchronous>, transform_indices = @transform_5, window_bounds = array<i64: 128, 128>}, {pipeline_mode = #tpu.pipeline_mode<synchronous>, transform_indices = @transform_6, window_bounds = array<i64: 1, 128>}, {pipeline_mode = #tpu.pipeline_mode<synchronous>, transform_indices = @transform_7, window_bounds = array<i64: 128, 128>}, {pipeline_mode = #tpu.pipeline_mode<synchronous>, transform_indices = @transform_8, window_bounds = array<i64: 1, 128>}, {pipeline_mode = #tpu.pipeline_mode<synchronous>, transform_indices = @transform_9, window_bounds = array<i64: 128, 8>}, {pipeline_mode = #tpu.pipeline_mode<synchronous>, transform_indices = @transform_10, window_bounds = array<i64: 1, 8>}, {transform_indices = @transform_11, window_bounds = array<i64: 16, 8>}]} {
    %c0 = arith.constant 0 : index
    %c0_0 = arith.constant 0 : index
    %0 = vector.load %arg1[%c0, %c0_0] : memref<16x125xf32, #tpu.memory_space<vmem>>, vector<16x125xf32>
    %1 = arith.truncf %0 : vector<16x125xf32> to vector<16x125xbf16>
    %c0_1 = arith.constant 0 : index
    %c0_2 = arith.constant 0 : index
    %2 = vector.load %arg2[%c0_1, %c0_2] : memref<125x128xbf16, #tpu.memory_space<vmem>>, vector<125x128xbf16>
    %cst = arith.constant dense<0.000000e+00> : vector<16x128xf32>
    %3 = tpu.matmul %1, %2, %cst {dimension_numbers = #tpu.dot_dimension_numbers<[1], [0], [0], [1], [0, 0, 1, 1], [], []>} : vector<16x125xbf16>, vector<125x128xbf16>, vector<16x128xf32> -> vector<16x128xf32>
    %c0_3 = arith.constant 0 : index
    %c0_4 = arith.constant 0 : index
    %4 = vector.load %arg3[%c0_3, %c0_4] : memref<1x128xf32, #tpu.memory_space<vmem>>, vector<1x128xf32>
    %5 = vector.broadcast %4 : vector<1x128xf32> to vector<16x128xf32>
    %6 = arith.addf %3, %5 : vector<16x128xf32>
    %cst_5 = arith.constant 0.000000e+00 : f32
    %7 = vector.broadcast %cst_5 : f32 to vector<16x128xf32>
    %8 = arith.maximumf %6, %7 : vector<16x128xf32>
    %9 = arith.truncf %8 : vector<16x128xf32> to vector<16x128xbf16>
    %c0_6 = arith.constant 0 : index
    %c0_7 = arith.constant 0 : index
    %10 = vector.load %arg4[%c0_6, %c0_7] : memref<128x128xbf16, #tpu.memory_space<vmem>>, vector<128x128xbf16>
    %cst_8 = arith.constant dense<0.000000e+00> : vector<16x128xf32>
    %11 = tpu.matmul %9, %10, %cst_8 {dimension_numbers = #tpu.dot_dimension_numbers<[1], [0], [0], [1], [0, 0, 1, 1], [], []>} : vector<16x128xbf16>, vector<128x128xbf16>, vector<16x128xf32> -> vector<16x128xf32>
    %c0_9 = arith.constant 0 : index
    %c0_10 = arith.constant 0 : index
    %12 = vector.load %arg5[%c0_9, %c0_10] : memref<1x128xf32, #tpu.memory_space<vmem>>, vector<1x128xf32>
    %13 = vector.broadcast %12 : vector<1x128xf32> to vector<16x128xf32>
    %14 = arith.addf %11, %13 : vector<16x128xf32>
    %cst_11 = arith.constant 0.000000e+00 : f32
    %15 = vector.broadcast %cst_11 : f32 to vector<16x128xf32>
    %16 = arith.maximumf %14, %15 : vector<16x128xf32>
    %17 = arith.truncf %16 : vector<16x128xf32> to vector<16x128xbf16>
    %c0_12 = arith.constant 0 : index
    %c0_13 = arith.constant 0 : index
    %18 = vector.load %arg6[%c0_12, %c0_13] : memref<128x128xbf16, #tpu.memory_space<vmem>>, vector<128x128xbf16>
    %cst_14 = arith.constant dense<0.000000e+00> : vector<16x128xf32>
    %19 = tpu.matmul %17, %18, %cst_14 {dimension_numbers = #tpu.dot_dimension_numbers<[1], [0], [0], [1], [0, 0, 1, 1], [], []>} : vector<16x128xbf16>, vector<128x128xbf16>, vector<16x128xf32> -> vector<16x128xf32>
    %c0_15 = arith.constant 0 : index
    %c0_16 = arith.constant 0 : index
    %20 = vector.load %arg7[%c0_15, %c0_16] : memref<1x128xf32, #tpu.memory_space<vmem>>, vector<1x128xf32>
    %21 = vector.broadcast %20 : vector<1x128xf32> to vector<16x128xf32>
    %22 = arith.addf %19, %21 : vector<16x128xf32>
    %cst_17 = arith.constant 0.000000e+00 : f32
    %23 = vector.broadcast %cst_17 : f32 to vector<16x128xf32>
    %24 = arith.maximumf %22, %23 : vector<16x128xf32>
    %25 = arith.truncf %24 : vector<16x128xf32> to vector<16x128xbf16>
    %c0_18 = arith.constant 0 : index
    %c0_19 = arith.constant 0 : index
    %26 = vector.load %arg8[%c0_18, %c0_19] : memref<128x128xbf16, #tpu.memory_space<vmem>>, vector<128x128xbf16>
    %cst_20 = arith.constant dense<0.000000e+00> : vector<16x128xf32>
    %27 = tpu.matmul %25, %26, %cst_20 {dimension_numbers = #tpu.dot_dimension_numbers<[1], [0], [0], [1], [0, 0, 1, 1], [], []>} : vector<16x128xbf16>, vector<128x128xbf16>, vector<16x128xf32> -> vector<16x128xf32>
    %c0_21 = arith.constant 0 : index
    %c0_22 = arith.constant 0 : index
    %28 = vector.load %arg9[%c0_21, %c0_22] : memref<1x128xf32, #tpu.memory_space<vmem>>, vector<1x128xf32>
    %29 = vector.broadcast %28 : vector<1x128xf32> to vector<16x128xf32>
    %30 = arith.addf %27, %29 : vector<16x128xf32>
    %cst_23 = arith.constant 0.000000e+00 : f32
    %31 = vector.broadcast %cst_23 : f32 to vector<16x128xf32>
    %32 = arith.maximumf %30, %31 : vector<16x128xf32>
    %33 = arith.truncf %32 : vector<16x128xf32> to vector<16x128xbf16>
    %c0_24 = arith.constant 0 : index
    %c0_25 = arith.constant 0 : index
    %34 = vector.load %arg10[%c0_24, %c0_25] : memref<128x8xbf16, #tpu.memory_space<vmem>>, vector<128x8xbf16>
    %cst_26 = arith.constant dense<0.000000e+00> : vector<16x8xf32>
    %35 = tpu.matmul %33, %34, %cst_26 {dimension_numbers = #tpu.dot_dimension_numbers<[1], [0], [0], [1], [0, 0, 1, 1], [], []>} : vector<16x128xbf16>, vector<128x8xbf16>, vector<16x8xf32> -> vector<16x8xf32>
    %c0_27 = arith.constant 0 : index
    %c0_28 = arith.constant 0 : index
    %36 = vector.load %arg11[%c0_27, %c0_28] : memref<1x8xf32, #tpu.memory_space<vmem>>, vector<1x8xf32>
    %37 = vector.broadcast %36 : vector<1x8xf32> to vector<16x8xf32>
    %38 = arith.addf %35, %37 : vector<16x8xf32>
    %c0_29 = arith.constant 0 : index
    %c0_30 = arith.constant 0 : index
    %39 = vector.load %arg12[%c0_29, %c0_30] : memref<16x8xf32, #tpu.memory_space<vmem>>, vector<16x8xf32>
    tpu.vector_store %arg12[%c0_29, %c0_30], %38 {strides = array<i32>} : memref<16x8xf32, #tpu.memory_space<vmem>>, vector<16x8xf32>,
    return
  }
  func.func @transform_0(%arg0: i32) -> (i32, i32) {
    %c0_i32 = arith.constant 0 : i32
    %c0_i32_0 = arith.constant 0 : i32
    return %arg0, %c0_i32 : i32, i32
  }
  func.func @transform_1(%arg0: i32) -> (i32, i32) {
    %c0_i32 = arith.constant 0 : i32
    %c0_i32_0 = arith.constant 0 : i32
    %c0_i32_1 = arith.constant 0 : i32
    return %c0_i32, %c0_i32_0 : i32, i32
  }
  func.func @transform_2(%arg0: i32) -> (i32, i32) {
    %c0_i32 = arith.constant 0 : i32
    %c0_i32_0 = arith.constant 0 : i32
    %c0_i32_1 = arith.constant 0 : i32
    return %c0_i32, %c0_i32_0 : i32, i32
  }
  func.func @transform_3(%arg0: i32) -> (i32, i32) {
    %c0_i32 = arith.constant 0 : i32
    %c0_i32_0 = arith.constant 0 : i32
    %c0_i32_1 = arith.constant 0 : i32
    return %c0_i32, %c0_i32_0 : i32, i32
  }
  func.func @transform_4(%arg0: i32) -> (i32, i32) {
    %c0_i32 = arith.constant 0 : i32
    %c0_i32_0 = arith.constant 0 : i32
    %c0_i32_1 = arith.constant 0 : i32
    return %c0_i32, %c0_i32_0 : i32, i32
  }
  func.func @transform_5(%arg0: i32) -> (i32, i32) {
    %c0_i32 = arith.constant 0 : i32
    %c0_i32_0 = arith.constant 0 : i32
    %c0_i32_1 = arith.constant 0 : i32
    return %c0_i32, %c0_i32_0 : i32, i32
  }
  func.func @transform_6(%arg0: i32) -> (i32, i32) {
    %c0_i32 = arith.constant 0 : i32
    %c0_i32_0 = arith.constant 0 : i32
    %c0_i32_1 = arith.constant 0 : i32
    return %c0_i32, %c0_i32_0 : i32, i32
  }
  func.func @transform_7(%arg0: i32) -> (i32, i32) {
    %c0_i32 = arith.constant 0 : i32
    %c0_i32_0 = arith.constant 0 : i32
    %c0_i32_1 = arith.constant 0 : i32
    return %c0_i32, %c0_i32_0 : i32, i32
  }
  func.func @transform_8(%arg0: i32) -> (i32, i32) {
    %c0_i32 = arith.constant 0 : i32
    %c0_i32_0 = arith.constant 0 : i32
    %c0_i32_1 = arith.constant 0 : i32
    return %c0_i32, %c0_i32_0 : i32, i32
  }
  func.func @transform_9(%arg0: i32) -> (i32, i32) {
    %c0_i32 = arith.constant 0 : i32
    %c0_i32_0 = arith.constant 0 : i32
    %c0_i32_1 = arith.constant 0 : i32
    return %c0_i32, %c0_i32_0 : i32, i32
  }
  func.func @transform_10(%arg0: i32) -> (i32, i32) {
    %c0_i32 = arith.constant 0 : i32
    %c0_i32_0 = arith.constant 0 : i32
    %c0_i32_1 = arith.constant 0 : i32
    return %c0_i32, %c0_i32_0 : i32, i32
  }
  func.func @transform_11(%arg0: i32) -> (i32, i32) {
    %c0_i32 = arith.constant 0 : i32
    %c0_i32_0 = arith.constant 0 : i32
    return %arg0, %c0_i32 : i32, i32
  }
}

</mosaic_0001>

<llo_original>
// kernel: tpu_custom_call.1
$region0: #{tpu_custom_call.1}
  #allocation0 [shape = 'u32[]', space=smem, size = 0x4, offset = 0x4, fixed_abs, tag = 'smem constant byte address 0x4 - core index']
  #allocation1 [shape = 'u32[144,128]{1,0:T(1,128)}', space=vmem, size = 0x12000, scoped, tag = 'internal scratch']
  %s0 = inlined_call_operand.hbm [shape: f32[16,125], index: 0, kind: input, shape index: {}]
  %s1 = inlined_call_operand.vmem [shape: bf16[125,128], index: 1, kind: input, shape index: {}]
  %s2 = inlined_call_operand.vmem [shape: f32[1,128], index: 2, kind: input, shape index: {}]
  %s3 = inlined_call_operand.hbm [shape: bf16[128,128], index: 3, kind: input, shape index: {}]
  %s4 = inlined_call_operand.vmem [shape: f32[1,128], index: 4, kind: input, shape index: {}]
  %s5 = inlined_call_operand.hbm [shape: bf16[128,128], index: 5, kind: input, shape index: {}]
  %s6 = inlined_call_operand.vmem [shape: f32[1,128], index: 6, kind: input, shape index: {}]
  %s7 = inlined_call_operand.hbm [shape: bf16[128,128], index: 7, kind: input, shape index: {}]
  %s8 = inlined_call_operand.vmem [shape: f32[1,128], index: 8, kind: input, shape index: {}]
  %s9 = inlined_call_operand.vmem [shape: bf16[128,8], index: 9, kind: input, shape index: {}]
  %s10 = inlined_call_operand.vmem [shape: f32[1,8], index: 10, kind: input, shape index: {}]
  %s11 = inlined_call_operand.vmem [shape: f32[16,8], index: 11, kind: output, shape index: {}]
  %s12 = sld [smem:[#allocation0]]
  $region70: #{tpu_custom_call.1} parent=0
    _
  %s14 = ssub.s32 1, %s12
  %s15 = scalar_select 0, %s14, %s12
  $region1: #{tpu_custom_call.1} parent=0
    #allocation2 [shape = 'u8[8192]{0}', space=vmem, size = 0x2000, scoped, tag = 'input window, operand 0, single buffered']
    #allocation3 [shape = 's32[1]{0}', space=sflag, size = 0x4, scoped, tag = 'scoped memory for tpu_custom_call.1']
    #allocation4 [shape = 'u8[32768]{0}', space=vmem, size = 0x8000, scoped, tag = 'input window, operand 3, single buffered']
    #allocation5 [shape = 's32[1]{0}', space=sflag, size = 0x4, scoped, tag = 'scoped memory for tpu_custom_call.1']
    #allocation6 [shape = 'u8[32768]{0}', space=vmem, size = 0x8000, scoped, tag = 'input window, operand 5, single buffered']
    #allocation7 [shape = 'u8[32768]{0}', space=vmem, size = 0x8000, scoped, tag = 'input window, operand 7, single buffered']
    #allocation8 [shape = 's32[1]{0}', space=sflag, size = 0x4, scoped, tag = 'scoped memory for tpu_custom_call.1']
    %16 = vsyncpa [#allocation3], 0
    %17 = vsyncpa [#allocation5], 0
    %18 = vsyncpa [#allocation8], 0
    // Predicated region
    $region2: #{tpu_custom_call.1} parent=1 // pred_check
      _
    $region3: #{tpu_custom_call.1} parent=1 // pred_check_branch
      %20 = sbr.rel (0) target = $region5
    $region4: #{tpu_custom_call.1} parent=1 // pred_region
      %s22 = ssub.s32 256, 256
      %23 = vsyncadd [#allocation3], %s22
      %s24 = sshll.u32 [#allocation2], 4
      %s25 = int_to_ptr.vmem [resolvable:$true] %s24
      %30 = dma.hbm_to_vmem [thread:$0]  %s0, 256, %s25, [#allocation3], 128, 128, 8
    $region5: #{tpu_custom_call.1} parent=1 // pred_fallthru
      _
    // Predicated region
    $region6: #{tpu_custom_call.1} parent=1 // pred_check
      _
    $region7: #{tpu_custom_call.1} parent=1 // pred_check_branch
      %32 = sbr.rel (0) target = $region9
    $region8: #{tpu_custom_call.1} parent=1 // pred_region
      _
    $region9: #{tpu_custom_call.1} parent=1 // pred_fallthru
      _
    // Predicated region
    $region10: #{tpu_custom_call.1} parent=1 // pred_check
      _
    $region11: #{tpu_custom_call.1} parent=1 // pred_check_branch
      %34 = sbr.rel (0) target = $region13
    $region12: #{tpu_custom_call.1} parent=1 // pred_region
      _
    $region13: #{tpu_custom_call.1} parent=1 // pred_fallthru
      _
    // Predicated region
    $region14: #{tpu_custom_call.1} parent=1 // pred_check
      _
    $region15: #{tpu_custom_call.1} parent=1 // pred_check_branch
      %36 = sbr.rel (0) target = $region17
    $region16: #{tpu_custom_call.1} parent=1 // pred_region
      %s38 = ssub.s32 1024, 1024
      %39 = vsyncadd [#allocation5], %s38
      %s40 = sshll.u32 [#allocation4], 4
      %s41 = int_to_ptr.vmem [resolvable:$true] %s40
      %46 = dma.hbm_to_vmem [thread:$0]  %s3, 1024, %s41, [#allocation5], 64, 64, 4
    $region17: #{tpu_custom_call.1} parent=1 // pred_fallthru
      _
    // Predicated region
    $region18: #{tpu_custom_call.1} parent=1 // pred_check
      _
    $region19: #{tpu_custom_call.1} parent=1 // pred_check_branch
      %48 = sbr.rel (0) target = $region21
    $region20: #{tpu_custom_call.1} parent=1 // pred_region
      _
    $region21: #{tpu_custom_call.1} parent=1 // pred_fallthru
      _
    // Predicated region
    $region22: #{tpu_custom_call.1} parent=1 // pred_check
      _
    $region23: #{tpu_custom_call.1} parent=1 // pred_check_branch
      %50 = sbr.rel (0) target = $region25
    $region24: #{tpu_custom_call.1} parent=1 // pred_region
      %s52 = ssub.s32 1024, 1024
      %53 = vsyncadd [#allocation5], %s52
      %s54 = sshll.u32 [#allocation6], 4
      %s55 = int_to_ptr.vmem [resolvable:$true] %s54
      %60 = dma.hbm_to_vmem [thread:$0]  %s5, 1024, %s55, [#allocation5], 64, 64, 4
    $region25: #{tpu_custom_call.1} parent=1 // pred_fallthru
      _
    // Predicated region
    $region26: #{tpu_custom_call.1} parent=1 // pred_check
      _
    $region27: #{tpu_custom_call.1} parent=1 // pred_check_branch
      %62 = sbr.rel (0) target = $region29
    $region28: #{tpu_custom_call.1} parent=1 // pred_region
      _
    $region29: #{tpu_custom_call.1} parent=1 // pred_fallthru
      _
    // Predicated region
    $region30: #{tpu_custom_call.1} parent=1 // pred_check
      _
    $region31: #{tpu_custom_call.1} parent=1 // pred_check_branch
      %64 = sbr.rel (0) target = $region33
    $region32: #{tpu_custom_call.1} parent=1 // pred_region
      %s66 = ssub.s32 1024, 1024
      %67 = vsyncadd [#allocation8], %s66
      %s68 = sshll.u32 [#allocation7], 4
      %s69 = int_to_ptr.vmem [resolvable:$true] %s68
      %74 = dma.hbm_to_vmem [thread:$0]  %s7, 1024, %s69, [#allocation8], 64, 64, 4
    $region33: #{tpu_custom_call.1} parent=1 // pred_fallthru
      _
    // Predicated region
    $region34: #{tpu_custom_call.1} parent=1 // pred_check
      _
    $region35: #{tpu_custom_call.1} parent=1 // pred_check_branch
      %76 = sbr.rel (0) target = $region37
    $region36: #{tpu_custom_call.1} parent=1 // pred_region
      _
    $region37: #{tpu_custom_call.1} parent=1 // pred_fallthru
      _
    // Predicated region
    $region38: #{tpu_custom_call.1} parent=1 // pred_check
      _
    $region39: #{tpu_custom_call.1} parent=1 // pred_check_branch
      %78 = sbr.rel (0) target = $region41
    $region40: #{tpu_custom_call.1} parent=1 // pred_region
      _
    $region41: #{tpu_custom_call.1} parent=1 // pred_fallthru
      _
    // Predicated region
    $region42: #{tpu_custom_call.1} parent=1 // pred_check
      _
    $region43: #{tpu_custom_call.1} parent=1 // pred_check_branch
      %80 = sbr.rel (0) target = $region45
    $region44: #{tpu_custom_call.1} parent=1 // pred_region
      _
    $region45: #{tpu_custom_call.1} parent=1 // pred_fallthru
      _
    // Predicated region
    $region46: #{tpu_custom_call.1} parent=1 // pred_check
      _
    $region47: #{tpu_custom_call.1} parent=1 // pred_check_branch
      %82 = sbr.rel (0) target = $region49
    $region48: #{tpu_custom_call.1} parent=1 // pred_region
      %83 = dma.done [#allocation3], 256
    $region49: #{tpu_custom_call.1} parent=1 // pred_fallthru
      _
    // Predicated region
    $region50: #{tpu_custom_call.1} parent=1 // pred_check
      _
    $region51: #{tpu_custom_call.1} parent=1 // pred_check_branch
      %85 = sbr.rel (0) target = $region53
    $region52: #{tpu_custom_call.1} parent=1 // pred_region
      %86 = dma.done [#allocation5], 1024
    $region53: #{tpu_custom_call.1} parent=1 // pred_fallthru
      _
    // Predicated region
    $region54: #{tpu_custom_call.1} parent=1 // pred_check
      _
    $region55: #{tpu_custom_call.1} parent=1 // pred_check_branch
      %88 = sbr.rel (0) target = $region57
    $region56: #{tpu_custom_call.1} parent=1 // pred_region
      %89 = dma.done [#allocation5], 1024
    $region57: #{tpu_custom_call.1} parent=1 // pred_fallthru
      _
    // Predicated region
    $region58: #{tpu_custom_call.1} parent=1 // pred_check
      _
    $region59: #{tpu_custom_call.1} parent=1 // pred_check_branch
      %91 = sbr.rel (0) target = $region61
    $region60: #{tpu_custom_call.1} parent=1 // pred_region
      %92 = dma.done [#allocation8], 1024
    $region61: #{tpu_custom_call.1} parent=1 // pred_fallthru
      _
    %v94 = vld [vmem:[#allocation2] sm:$0xff]
    %v95 = vld [vmem:[#allocation2 + $0x8] sm:$0xff]
    %v96 = vpack.c.bf16 %v95, %v94
    %v97 = vld [vmem:[%s1] sm:$0xf]
    %v98 = vld [vmem:[%s1 + $0x4] sm:$0xf]
    %v99 = vld [vmem:[%s1 + $0x8] sm:$0xf]
    %v100 = vld [vmem:[%s1 + $0xc] sm:$0xf]
    %v101 = vld [vmem:[%s1 + $0x10] sm:$0xf]
    %v102 = vld [vmem:[%s1 + $0x14] sm:$0xf]
    %v103 = vld [vmem:[%s1 + $0x18] sm:$0xf]
    %v104 = vld [vmem:[%s1 + $0x1c] sm:$0xf]
    %v105 = vld [vmem:[%s1 + $0x20] sm:$0xf]
    %v106 = vld [vmem:[%s1 + $0x24] sm:$0xf]
    %v107 = vld [vmem:[%s1 + $0x28] sm:$0xf]
    %v108 = vld [vmem:[%s1 + $0x2c] sm:$0xf]
    %v109 = vld [vmem:[%s1 + $0x30] sm:$0xf]
    %v110 = vld [vmem:[%s1 + $0x34] sm:$0xf]
    %v111 = vld [vmem:[%s1 + $0x38] sm:$0xf]
    %v112 = vld [vmem:[%s1 + $0x3c] sm:$0x7]
    %v113 = vld [vmem:[%s2] sm:$0x1]
    %v115 = vlaneseq
    %v116 = vshrl.u32 %v115, 7
    %v117 = vsub.s32 0, %v116
    %v118 = vrot.slane %v113, %v117
    %v136 = vunpack.c.l.b16 %v97
    %v137 = vunpack.c.l.b16 %v98
    %v138 = vunpack.c.l.b16 %v99
    %v139 = vunpack.c.l.b16 %v100
    %v140 = vunpack.c.l.b16 %v101
    %v141 = vunpack.c.l.b16 %v102
    %v142 = vunpack.c.l.b16 %v103
    %v143 = vunpack.c.l.b16 %v104
    %v144 = vunpack.c.l.b16 %v105
    %v145 = vunpack.c.l.b16 %v106
    %v146 = vunpack.c.l.b16 %v107
    %v147 = vunpack.c.l.b16 %v108
    %v148 = vunpack.c.l.b16 %v109
    %v149 = vunpack.c.l.b16 %v110
    %v150 = vunpack.c.l.b16 %v111
    %v151 = vunpack.c.l.b16 %v112
    %v152 = vpack.c.b16 %v137, %v136
    %v153 = vpack.c.b16 %v139, %v138
    %v154 = vpack.c.b16 %v141, %v140
    %v155 = vpack.c.b16 %v143, %v142
    %v156 = vpack.c.b16 %v145, %v144
    %v157 = vpack.c.b16 %v147, %v146
    %v158 = vpack.c.b16 %v149, %v148
    %v159 = vpack.c.b16 %v151, %v150
    %vm167 = vcmask 1022976
    %v169 = vsel %vm167, %v96, 0
    %vm171 = vcmask 1045504
    %vm172 = vcmask 1046528
    %v173 = vsel %vm171, 4294967295, 65535
    %v174 = vsel %vm172, %v173, 0
    %v176 = vand.u32 %v159, %v174
    %178 = vmatprep.subr.bf16.mxu0 0
    %179 = vmatpush1.bf16.msra.mxu0 %v152
    %180 = vmatprep.subr.bf16.mxu0 0
    %181 = vmatpush1.bf16.msra.mxu0 %v153
    %182 = vmatprep.subr.bf16.mxu0 0
    %183 = vmatpush1.bf16.msra.mxu0 %v154
    %184 = vmatprep.subr.bf16.mxu0 0
    %185 = vmatpush1.bf16.msra.mxu0 %v155
    %186 = vmatprep.subr.bf16.mxu0 0
    %187 = vmatpush1.bf16.msra.mxu0 %v156
    %188 = vmatprep.subr.bf16.mxu0 0
    %189 = vmatpush1.bf16.msra.mxu0 %v157
    %190 = vmatprep.subr.bf16.mxu0 0
    %191 = vmatpush1.bf16.msra.mxu0 %v158
    %192 = vmatprep.subr.bf16.mxu0 0
    %193 = vmatpush1.bf16.msra.mxu0 %v176
    %194 = vmatprep.subr.bf16.mxu0 0
    %195 = vmatpush1.bf16.msra.mxu0 0
    %196 = vmatprep.subr.bf16.mxu0 0
    %197 = vmatpush1.bf16.msra.mxu0 0
    %198 = vmatprep.subr.bf16.mxu0 0
    %199 = vmatpush1.bf16.msra.mxu0 0
    %200 = vmatprep.subr.bf16.mxu0 0
    %201 = vmatpush1.bf16.msra.mxu0 0
    %202 = vmatprep.subr.bf16.mxu0 0
    %203 = vmatpush1.bf16.msra.mxu0 0
    %204 = vmatprep.subr.bf16.mxu0 0
    %205 = vmatpush1.bf16.msra.mxu0 0
    %206 = vmatprep.subr.bf16.mxu0 0
    %207 = vmatpush1.bf16.msra.mxu0 0
    %208 = vmatprep.subr.bf16.mxu0 0
    %209 = vmatpush1.bf16.msra.mxu0 0
    %210 = vmatprep.mubr.bf16.mxu0 0
    %211 = vmatmul.mubr.bf16.gmra.mrb[0].mxu0 %v169
    %v212 = vpop.f32.mrb[0].mxu0
    %v213 = vadd.f32 %v118, %v212
    %v214 = vpop.f32.mrb[0].mxu0
    %v215 = vpop.f32.mrb[0].mxu0
    %v216 = vadd.f32 %v118, %v215
    %v217 = vpop.f32.mrb[0].mxu0
    %218 = vdwg.mxu0
    %v219 = vmax.f32 %v213, 0.0
    %v220 = vmax.f32 %v216, 0.0
    %v221 = vpack.c.bf16 %v220, %v219
    %v222 = vld [vmem:[#allocation4] sm:$0xf]
    %v223 = vld [vmem:[#allocation4 + $0x4] sm:$0xf]
    %v224 = vld [vmem:[#allocation4 + $0x8] sm:$0xf]
    %v225 = vld [vmem:[#allocation4 + $0xc] sm:$0xf]
    %v226 = vld [vmem:[#allocation4 + $0x10] sm:$0xf]
    %v227 = vld [vmem:[#allocation4 + $0x14] sm:$0xf]
    %v228 = vld [vmem:[#allocation4 + $0x18] sm:$0xf]
    %v229 = vld [vmem:[#allocation4 + $0x1c] sm:$0xf]
    %v230 = vld [vmem:[#allocation4 + $0x20] sm:$0xf]
    %v231 = vld [vmem:[#allocation4 + $0x24] sm:$0xf]
    %v232 = vld [vmem:[#allocation4 + $0x28] sm:$0xf]
    %v233 = vld [vmem:[#allocation4 + $0x2c] sm:$0xf]
    %v234 = vld [vmem:[#allocation4 + $0x30] sm:$0xf]
    %v235 = vld [vmem:[#allocation4 + $0x34] sm:$0xf]
    %v236 = vld [vmem:[#allocation4 + $0x38] sm:$0xf]
    %v237 = vld [vmem:[#allocation4 + $0x3c] sm:$0xf]
    %v238 = vld [vmem:[%s4] sm:$0x1]
    %v240 = vlaneseq
    %v241 = vshrl.u32 %v240, 7
    %v242 = vsub.s32 0, %v241
    %v243 = vrot.slane %v238, %v242
    %v261 = vunpack.c.l.b16 %v222
    %v262 = vunpack.c.l.b16 %v223
    %v263 = vunpack.c.l.b16 %v224
    %v264 = vunpack.c.l.b16 %v225
    %v265 = vunpack.c.l.b16 %v226
    %v266 = vunpack.c.l.b16 %v227
    %v267 = vunpack.c.l.b16 %v228
    %v268 = vunpack.c.l.b16 %v229
    %v269 = vunpack.c.l.b16 %v230
    %v270 = vunpack.c.l.b16 %v231
    %v271 = vunpack.c.l.b16 %v232
    %v272 = vunpack.c.l.b16 %v233
    %v273 = vunpack.c.l.b16 %v234
    %v274 = vunpack.c.l.b16 %v235
    %v275 = vunpack.c.l.b16 %v236
    %v276 = vunpack.c.l.b16 %v237
    %v277 = vpack.c.b16 %v262, %v261
    %v278 = vpack.c.b16 %v264, %v263
    %v279 = vpack.c.b16 %v266, %v265
    %v280 = vpack.c.b16 %v268, %v267
    %v281 = vpack.c.b16 %v270, %v269
    %v282 = vpack.c.b16 %v272, %v271
    %v283 = vpack.c.b16 %v274, %v273
    %v284 = vpack.c.b16 %v276, %v275
    %293 = vmatprep.subr.bf16.mxu0 0
    %294 = vmatpush1.bf16.msra.mxu0 %v277
    %295 = vmatprep.subr.bf16.mxu0 0
    %296 = vmatpush1.bf16.msra.mxu0 %v278
    %297 = vmatprep.subr.bf16.mxu0 0
    %298 = vmatpush1.bf16.msra.mxu0 %v279
    %299 = vmatprep.subr.bf16.mxu0 0
    %300 = vmatpush1.bf16.msra.mxu0 %v280
    %301 = vmatprep.subr.bf16.mxu0 0
    %302 = vmatpush1.bf16.msra.mxu0 %v281
    %303 = vmatprep.subr.bf16.mxu0 0
    %304 = vmatpush1.bf16.msra.mxu0 %v282
    %305 = vmatprep.subr.bf16.mxu0 0
    %306 = vmatpush1.bf16.msra.mxu0 %v283
    %307 = vmatprep.subr.bf16.mxu0 0
    %308 = vmatpush1.bf16.msra.mxu0 %v284
    %309 = vmatprep.subr.bf16.mxu0 0
    %310 = vmatpush1.bf16.msra.mxu0 0
    %311 = vmatprep.subr.bf16.mxu0 0
    %312 = vmatpush1.bf16.msra.mxu0 0
    %313 = vmatprep.subr.bf16.mxu0 0
    %314 = vmatpush1.bf16.msra.mxu0 0
    %315 = vmatprep.subr.bf16.mxu0 0
    %316 = vmatpush1.bf16.msra.mxu0 0
    %317 = vmatprep.subr.bf16.mxu0 0
    %318 = vmatpush1.bf16.msra.mxu0 0
    %319 = vmatprep.subr.bf16.mxu0 0
    %320 = vmatpush1.bf16.msra.mxu0 0
    %321 = vmatprep.subr.bf16.mxu0 0
    %322 = vmatpush1.bf16.msra.mxu0 0
    %323 = vmatprep.subr.bf16.mxu0 0
    %324 = vmatpush1.bf16.msra.mxu0 0
    %325 = vmatprep.mubr.bf16.mxu0 0
    %326 = vmatmul.mubr.bf16.gmra.mrb[0].mxu0 %v221
    %v327 = vpop.f32.mrb[0].mxu0
    %v328 = vadd.f32 %v243, %v327
    %v329 = vpop.f32.mrb[0].mxu0
    %v330 = vpop.f32.mrb[0].mxu0
    %v331 = vadd.f32 %v243, %v330
    %v332 = vpop.f32.mrb[0].mxu0
    %333 = vdwg.mxu0
    %v334 = vmax.f32 %v328, 0.0
    %v335 = vmax.f32 %v331, 0.0
    %v336 = vpack.c.bf16 %v335, %v334
    %v337 = vld [vmem:[#allocation6] sm:$0xf]
    %v338 = vld [vmem:[#allocation6 + $0x4] sm:$0xf]
    %v339 = vld [vmem:[#allocation6 + $0x8] sm:$0xf]
    %v340 = vld [vmem:[#allocation6 + $0xc] sm:$0xf]
    %v341 = vld [vmem:[#allocation6 + $0x10] sm:$0xf]
    %v342 = vld [vmem:[#allocation6 + $0x14] sm:$0xf]
    %v343 = vld [vmem:[#allocation6 + $0x18] sm:$0xf]
    %v344 = vld [vmem:[#allocation6 + $0x1c] sm:$0xf]
    %v345 = vld [vmem:[#allocation6 + $0x20] sm:$0xf]
    %v346 = vld [vmem:[#allocation6 + $0x24] sm:$0xf]
    %v347 = vld [vmem:[#allocation6 + $0x28] sm:$0xf]
    %v348 = vld [vmem:[#allocation6 + $0x2c] sm:$0xf]
    %v349 = vld [vmem:[#allocation6 + $0x30] sm:$0xf]
    %v350 = vld [vmem:[#allocation6 + $0x34] sm:$0xf]
    %v351 = vld [vmem:[#allocation6 + $0x38] sm:$0xf]
    %v352 = vld [vmem:[#allocation6 + $0x3c] sm:$0xf]
    %v353 = vld [vmem:[%s6] sm:$0x1]
    %v355 = vlaneseq
    %v356 = vshrl.u32 %v355, 7
    %v357 = vsub.s32 0, %v356
    %v358 = vrot.slane %v353, %v357
    %v376 = vunpack.c.l.b16 %v337
    %v377 = vunpack.c.l.b16 %v338
    %v378 = vunpack.c.l.b16 %v339
    %v379 = vunpack.c.l.b16 %v340
    %v380 = vunpack.c.l.b16 %v341
    %v381 = vunpack.c.l.b16 %v342
    %v382 = vunpack.c.l.b16 %v343
    %v383 = vunpack.c.l.b16 %v344
    %v384 = vunpack.c.l.b16 %v345
    %v385 = vunpack.c.l.b16 %v346
    %v386 = vunpack.c.l.b16 %v347
    %v387 = vunpack.c.l.b16 %v348
    %v388 = vunpack.c.l.b16 %v349
    %v389 = vunpack.c.l.b16 %v350
    %v390 = vunpack.c.l.b16 %v351
    %v391 = vunpack.c.l.b16 %v352
    %v392 = vpack.c.b16 %v377, %v376
    %v393 = vpack.c.b16 %v379, %v378
    %v394 = vpack.c.b16 %v381, %v380
    %v395 = vpack.c.b16 %v383, %v382
    %v396 = vpack.c.b16 %v385, %v384
    %v397 = vpack.c.b16 %v387, %v386
    %v398 = vpack.c.b16 %v389, %v388
    %v399 = vpack.c.b16 %v391, %v390
    %408 = vmatprep.subr.bf16.mxu0 0
    %409 = vmatpush1.bf16.msra.mxu0 %v392
    %410 = vmatprep.subr.bf16.mxu0 0
    %411 = vmatpush1.bf16.msra.mxu0 %v393
    %412 = vmatprep.subr.bf16.mxu0 0
    %413 = vmatpush1.bf16.msra.mxu0 %v394
    %414 = vmatprep.subr.bf16.mxu0 0
    %415 = vmatpush1.bf16.msra.mxu0 %v395
    %416 = vmatprep.subr.bf16.mxu0 0
    %417 = vmatpush1.bf16.msra.mxu0 %v396
    %418 = vmatprep.subr.bf16.mxu0 0
    %419 = vmatpush1.bf16.msra.mxu0 %v397
    %420 = vmatprep.subr.bf16.mxu0 0
    %421 = vmatpush1.bf16.msra.mxu0 %v398
    %422 = vmatprep.subr.bf16.mxu0 0
    %423 = vmatpush1.bf16.msra.mxu0 %v399
    %424 = vmatprep.subr.bf16.mxu0 0
    %425 = vmatpush1.bf16.msra.mxu0 0
    %426 = vmatprep.subr.bf16.mxu0 0
    %427 = vmatpush1.bf16.msra.mxu0 0
    %428 = vmatprep.subr.bf16.mxu0 0
    %429 = vmatpush1.bf16.msra.mxu0 0
    %430 = vmatprep.subr.bf16.mxu0 0
    %431 = vmatpush1.bf16.msra.mxu0 0
    %432 = vmatprep.subr.bf16.mxu0 0
    %433 = vmatpush1.bf16.msra.mxu0 0
    %434 = vmatprep.subr.bf16.mxu0 0
    %435 = vmatpush1.bf16.msra.mxu0 0
    %436 = vmatprep.subr.bf16.mxu0 0
    %437 = vmatpush1.bf16.msra.mxu0 0
    %438 = vmatprep.subr.bf16.mxu0 0
    %439 = vmatpush1.bf16.msra.mxu0 0
    %440 = vmatprep.mubr.bf16.mxu0 0
    %441 = vmatmul.mubr.bf16.gmra.mrb[0].mxu0 %v336
    %v442 = vpop.f32.mrb[0].mxu0
    %v443 = vadd.f32 %v358, %v442
    %v444 = vpop.f32.mrb[0].mxu0
    %v445 = vpop.f32.mrb[0].mxu0
    %v446 = vadd.f32 %v358, %v445
    %v447 = vpop.f32.mrb[0].mxu0
    %448 = vdwg.mxu0
    %v449 = vmax.f32 %v443, 0.0
    %v450 = vmax.f32 %v446, 0.0
    %v451 = vpack.c.bf16 %v450, %v449
    %v452 = vld [vmem:[#allocation7] sm:$0xf]
    %v453 = vld [vmem:[#allocation7 + $0x4] sm:$0xf]
    %v454 = vld [vmem:[#allocation7 + $0x8] sm:$0xf]
    %v455 = vld [vmem:[#allocation7 + $0xc] sm:$0xf]
    %v456 = vld [vmem:[#allocation7 + $0x10] sm:$0xf]
    %v457 = vld [vmem:[#allocation7 + $0x14] sm:$0xf]
    %v458 = vld [vmem:[#allocation7 + $0x18] sm:$0xf]
    %v459 = vld [vmem:[#allocation7 + $0x1c] sm:$0xf]
    %v460 = vld [vmem:[#allocation7 + $0x20] sm:$0xf]
    %v461 = vld [vmem:[#allocation7 + $0x24] sm:$0xf]
    %v462 = vld [vmem:[#allocation7 + $0x28] sm:$0xf]
    %v463 = vld [vmem:[#allocation7 + $0x2c] sm:$0xf]
    %v464 = vld [vmem:[#allocation7 + $0x30] sm:$0xf]
    %v465 = vld [vmem:[#allocation7 + $0x34] sm:$0xf]
    %v466 = vld [vmem:[#allocation7 + $0x38] sm:$0xf]
    %v467 = vld [vmem:[#allocation7 + $0x3c] sm:$0xf]
    %v468 = vld [vmem:[%s8] sm:$0x1]
    %v470 = vlaneseq
    %v471 = vshrl.u32 %v470, 7
    %v472 = vsub.s32 0, %v471
    %v473 = vrot.slane %v468, %v472
    %v491 = vunpack.c.l.b16 %v452
    %v492 = vunpack.c.l.b16 %v453
    %v493 = vunpack.c.l.b16 %v454
    %v494 = vunpack.c.l.b16 %v455
    %v495 = vunpack.c.l.b16 %v456
    %v496 = vunpack.c.l.b16 %v457
    %v497 = vunpack.c.l.b16 %v458
    %v498 = vunpack.c.l.b16 %v459
    %v499 = vunpack.c.l.b16 %v460
    %v500 = vunpack.c.l.b16 %v461
    %v501 = vunpack.c.l.b16 %v462
    %v502 = vunpack.c.l.b16 %v463
    %v503 = vunpack.c.l.b16 %v464
    %v504 = vunpack.c.l.b16 %v465
    %v505 = vunpack.c.l.b16 %v466
    %v506 = vunpack.c.l.b16 %v467
    %v507 = vpack.c.b16 %v492, %v491
    %v508 = vpack.c.b16 %v494, %v493
    %v509 = vpack.c.b16 %v496, %v495
    %v510 = vpack.c.b16 %v498, %v497
    %v511 = vpack.c.b16 %v500, %v499
    %v512 = vpack.c.b16 %v502, %v501
    %v513 = vpack.c.b16 %v504, %v503
    %v514 = vpack.c.b16 %v506, %v505
    %523 = vmatprep.subr.bf16.mxu0 0
    %524 = vmatpush1.bf16.msra.mxu0 %v507
    %525 = vmatprep.subr.bf16.mxu0 0
    %526 = vmatpush1.bf16.msra.mxu0 %v508
    %527 = vmatprep.subr.bf16.mxu0 0
    %528 = vmatpush1.bf16.msra.mxu0 %v509
    %529 = vmatprep.subr.bf16.mxu0 0
    %530 = vmatpush1.bf16.msra.mxu0 %v510
    %531 = vmatprep.subr.bf16.mxu0 0
    %532 = vmatpush1.bf16.msra.mxu0 %v511
    %533 = vmatprep.subr.bf16.mxu0 0
    %534 = vmatpush1.bf16.msra.mxu0 %v512
    %535 = vmatprep.subr.bf16.mxu0 0
    %536 = vmatpush1.bf16.msra.mxu0 %v513
    %537 = vmatprep.subr.bf16.mxu0 0
    %538 = vmatpush1.bf16.msra.mxu0 %v514
    %539 = vmatprep.subr.bf16.mxu0 0
    %540 = vmatpush1.bf16.msra.mxu0 0
    %541 = vmatprep.subr.bf16.mxu0 0
    %542 = vmatpush1.bf16.msra.mxu0 0
    %543 = vmatprep.subr.bf16.mxu0 0
    %544 = vmatpush1.bf16.msra.mxu0 0
    %545 = vmatprep.subr.bf16.mxu0 0
    %546 = vmatpush1.bf16.msra.mxu0 0
    %547 = vmatprep.subr.bf16.mxu0 0
    %548 = vmatpush1.bf16.msra.mxu0 0
    %549 = vmatprep.subr.bf16.mxu0 0
    %550 = vmatpush1.bf16.msra.mxu0 0
    %551 = vmatprep.subr.bf16.mxu0 0
    %552 = vmatpush1.bf16.msra.mxu0 0
    %553 = vmatprep.subr.bf16.mxu0 0
    %554 = vmatpush1.bf16.msra.mxu0 0
    %555 = vmatprep.mubr.bf16.mxu0 0
    %556 = vmatmul.mubr.bf16.gmra.mrb[0].mxu0 %v451
    %v557 = vpop.f32.mrb[0].mxu0
    %v558 = vadd.f32 %v473, %v557
    %v559 = vpop.f32.mrb[0].mxu0
    %v560 = vpop.f32.mrb[0].mxu0
    %v561 = vadd.f32 %v473, %v560
    %v562 = vpop.f32.mrb[0].mxu0
    %563 = vdwg.mxu0
    %v564 = vmax.f32 %v558, 0.0
    %v565 = vmax.f32 %v561, 0.0
    %v566 = vpack.c.bf16 %v565, %v564
    %v567 = vld [vmem:[%s9] sm:$0xf]
    %v568 = vld [vmem:[%s9 + $0x4] sm:$0xf]
    %v569 = vld [vmem:[%s9 + $0x8] sm:$0xf]
    %v570 = vld [vmem:[%s9 + $0xc] sm:$0xf]
    %v571 = vld [vmem:[%s9 + $0x10] sm:$0xf]
    %v572 = vld [vmem:[%s9 + $0x14] sm:$0xf]
    %v573 = vld [vmem:[%s9 + $0x18] sm:$0xf]
    %v574 = vld [vmem:[%s9 + $0x1c] sm:$0xf]
    %v575 = vld [vmem:[%s9 + $0x20] sm:$0xf]
    %v576 = vld [vmem:[%s9 + $0x24] sm:$0xf]
    %v577 = vld [vmem:[%s9 + $0x28] sm:$0xf]
    %v578 = vld [vmem:[%s9 + $0x2c] sm:$0xf]
    %v579 = vld [vmem:[%s9 + $0x30] sm:$0xf]
    %v580 = vld [vmem:[%s9 + $0x34] sm:$0xf]
    %v581 = vld [vmem:[%s9 + $0x38] sm:$0xf]
    %v582 = vld [vmem:[%s9 + $0x3c] sm:$0xf]
    %v583 = vld [vmem:[%s10] sm:$0x1]
    %v585 = vlaneseq
    %v586 = vshrl.u32 %v585, 7
    %v587 = vsub.s32 0, %v586
    %v588 = vrot.slane %v583, %v587
    %v606 = vunpack.c.l.b16 %v567
    %v607 = vunpack.c.l.b16 %v568
    %v608 = vunpack.c.l.b16 %v569
    %v609 = vunpack.c.l.b16 %v570
    %v610 = vunpack.c.l.b16 %v571
    %v611 = vunpack.c.l.b16 %v572
    %v612 = vunpack.c.l.b16 %v573
    %v613 = vunpack.c.l.b16 %v574
    %v614 = vunpack.c.l.b16 %v575
    %v615 = vunpack.c.l.b16 %v576
    %v616 = vunpack.c.l.b16 %v577
    %v617 = vunpack.c.l.b16 %v578
    %v618 = vunpack.c.l.b16 %v579
    %v619 = vunpack.c.l.b16 %v580
    %v620 = vunpack.c.l.b16 %v581
    %v621 = vunpack.c.l.b16 %v582
    %v622 = vpack.c.b16 %v607, %v606
    %v623 = vpack.c.b16 %v609, %v608
    %v624 = vpack.c.b16 %v611, %v610
    %v625 = vpack.c.b16 %v613, %v612
    %v626 = vpack.c.b16 %v615, %v614
    %v627 = vpack.c.b16 %v617, %v616
    %v628 = vpack.c.b16 %v619, %v618
    %v629 = vpack.c.b16 %v621, %v620
    %638 = vmatprep.subr.bf16.mxu0 0
    %639 = vmatpush1.bf16.msra.mxu0 %v622
    %640 = vmatprep.subr.bf16.mxu0 0
    %641 = vmatpush1.bf16.msra.mxu0 %v623
    %642 = vmatprep.subr.bf16.mxu0 0
    %643 = vmatpush1.bf16.msra.mxu0 %v624
    %644 = vmatprep.subr.bf16.mxu0 0
    %645 = vmatpush1.bf16.msra.mxu0 %v625
    %646 = vmatprep.subr.bf16.mxu0 0
    %647 = vmatpush1.bf16.msra.mxu0 %v626
    %648 = vmatprep.subr.bf16.mxu0 0
    %649 = vmatpush1.bf16.msra.mxu0 %v627
    %650 = vmatprep.subr.bf16.mxu0 0
    %651 = vmatpush1.bf16.msra.mxu0 %v628
    %652 = vmatprep.subr.bf16.mxu0 0
    %653 = vmatpush1.bf16.msra.mxu0 %v629
    %654 = vmatprep.subr.bf16.mxu0 0
    %655 = vmatpush1.bf16.msra.mxu0 0
    %656 = vmatprep.subr.bf16.mxu0 0
    %657 = vmatpush1.bf16.msra.mxu0 0
    %658 = vmatprep.subr.bf16.mxu0 0
    %659 = vmatpush1.bf16.msra.mxu0 0
    %660 = vmatprep.subr.bf16.mxu0 0
    %661 = vmatpush1.bf16.msra.mxu0 0
    %662 = vmatprep.subr.bf16.mxu0 0
    %663 = vmatpush1.bf16.msra.mxu0 0
    %664 = vmatprep.subr.bf16.mxu0 0
    %665 = vmatpush1.bf16.msra.mxu0 0
    %666 = vmatprep.subr.bf16.mxu0 0
    %667 = vmatpush1.bf16.msra.mxu0 0
    %668 = vmatprep.subr.bf16.mxu0 0
    %669 = vmatpush1.bf16.msra.mxu0 0
    %670 = vmatprep.mubr.bf16.mxu0 0
    %671 = vmatmul.mubr.bf16.gmra.mrb[0].mxu0 %v566
    %v672 = vpop.f32.mrb[0].mxu0
    %v673 = vadd.f32 %v588, %v672
    %v674 = vpop.f32.mrb[0].mxu0
    %v675 = vpop.f32.mrb[0].mxu0
    %v676 = vadd.f32 %v588, %v675
    %v677 = vpop.f32.mrb[0].mxu0
    %678 = vdwg.mxu0
    %vm679 = vcmask 64512
    %680 = vst.msk [vmem:[%s11] sm:$0xff] %vm679, %v673
    %681 = vst.msk [vmem:[%s11 + $0x8] sm:$0xff] %vm679, %v676
    // Predicated region
    $region62: #{tpu_custom_call.1} parent=1 // pred_check
      _
    $region63: #{tpu_custom_call.1} parent=1 // pred_check_branch
      %683 = sbr.rel (0) target = $region65
    $region64: #{tpu_custom_call.1} parent=1 // pred_region
      _
    $region65: #{tpu_custom_call.1} parent=1 // pred_fallthru
      _
    // Predicated region
    $region66: #{tpu_custom_call.1} parent=1 // pred_check
      _
    $region67: #{tpu_custom_call.1} parent=1 // pred_check_branch
      %685 = sbr.rel (0) target = $region69
    $region68: #{tpu_custom_call.1} parent=1 // pred_region
      _
    $region69: #{tpu_custom_call.1} parent=1 // pred_fallthru
      _
    %686 = vsyncpa [#allocation3], 1
    %687 = vsyncpa [#allocation5], 1
    %688 = vsyncpa [#allocation8], 1

</llo_original>
